<compile_context>
chip_gen: v6e
topology: v6e:2x2x1
jax: 0.10.0
libtpu: 0.0.40
codegen_flags: <defaults>
</compile_context>

<pallas_src>
import math

import jax
import jax.numpy as jnp
from jax.experimental import pallas as pl
from jax.experimental.pallas import tpu as pltpu


def _round_up(x, m):
    return ((x + m - 1) // m) * m


def _freqs(t_dim):
    half = t_dim // 2
    scale = math.log(10000.0) / (half - 1)
    return tuple(math.exp(-scale * i) for i in range(half))


def _mish(v):
    # mish(v) = v * tanh(softplus(v)) = v * e^v (e^v + 2) / (e^v (e^v + 2) + 2)
    # 1 EUP exp + 1 EUP reciprocal; the clamp keeps e^v (e^v + 2) finite in
    # f32 (the ratio is already exactly 1.0 there).
    ev = jnp.exp(jnp.minimum(v, 30.0))
    num = ev * (ev + 2.0)
    return v * num * pl.reciprocal(num + 2.0, approx=False)


def _make_kernel(t_dim, freqs):
    half = len(freqs)

    def kernel(time_ref, xs_ref,
               wt1_ref, bt1_ref, wm1_ref,
               wm2_ref, bm2_ref, wm3_ref, bm3_ref,
               wf_ref, bf_ref, o_ref):
        f32, bf16 = jnp.float32, jnp.bfloat16

        # ---- sinusoidal positional embedding of `time`, in-kernel (VPU/EUP).
        t = time_ref[...]                                    # (1, tb) f32
        tb = t.shape[1]
        row = jax.lax.broadcasted_iota(jnp.int32, (t_dim, tb), 0)
        fval = jnp.full((t_dim, tb), freqs[0], f32)
        for idx in range(1, half):
            fval = jnp.where(row % half == idx, freqs[idx], fval)
        arg = fval * t                                       # (t_dim, tb)
        emb = jnp.where(row < half, jnp.sin(arg), jnp.cos(arg))

        # ---- time-MLP linear 1 + Mish (linear 2 is folded into wm1_ref).
        t1 = _mish(jnp.dot(wt1_ref[...], emb.astype(bf16),
                           preferred_element_type=f32) + bt1_ref[...])

        # ---- mid layer 1 as ONE merged dot: [x; state; 1; pad] stacked over
        # t1.  The bias rides the ones row; both pieces are whole bf16 sublane
        # tiles (16 rows) so the concat is shift-free.
        stacked = jnp.concatenate([xs_ref[...], t1.astype(bf16)], axis=0)
        h = _mish(jnp.dot(wm1_ref[...], stacked, preferred_element_type=f32))
        h = _mish(jnp.dot(wm2_ref[...], h.astype(bf16),
                          preferred_element_type=f32) + bm2_ref[...])
        h = _mish(jnp.dot(wm3_ref[...], h.astype(bf16),
                          preferred_element_type=f32) + bm3_ref[...])

        # ---- final layer (lane-dense store: batch on the 128-lane axis).
        o_ref[...] = (jnp.dot(wf_ref[...], h.astype(bf16),
                              preferred_element_type=f32)
                      + bf_ref[...]).astype(o_ref.dtype)

    return kernel


def _prepare(params, x, time, state, t_dim):
    """Trace-time glue shared by the Pallas wrapper and the matched reference:
    fold the second time-linear into mid-layer 1, align rows to bf16 sublane
    tiles (16) and transpose everything into the feature-major layout."""
    f32, bf16 = jnp.float32, jnp.bfloat16
    B, a = x.shape
    s = state.shape[1]
    hidden = params["wm1"].shape[1]

    # fold the second time-MLP linear into mid-layer 1 (f32, trace time)
    wm1 = params["wm1"]
    wm1x, wm1t, wm1s = wm1[:a], wm1[a:a + t_dim], wm1[a + t_dim:]
    wcomb = params["wt2"] @ wm1t                     # (2*t_dim, hidden)
    bm1f = params["bm1"] + params["bt2"] @ wm1t      # (1, hidden)

    xs_rows = _round_up(a + s + 1, 16)               # x, state, ones(bias), pad
    t1_rows = _round_up(2 * t_dim, 16)               # padded time-MLP hidden

    # streamed feature-major activations (batch on the lane axis), bf16
    xs_aug = jnp.concatenate(
        [x.T, state.T, jnp.ones((1, B), f32),
         jnp.zeros((xs_rows - (a + s + 1), B), f32)], axis=0).astype(bf16)
    time_fm = time.reshape(1, B).astype(f32)

    # resident weights (bf16 MXU operands) and f32 biases
    wt1p = jnp.zeros((t1_rows, t_dim), f32).at[:2 * t_dim].set(params["wt1"].T)
    bt1p = jnp.zeros((t1_rows, 1), f32).at[:2 * t_dim].set(params["bt1"].T)
    wm1all = jnp.zeros((hidden, xs_rows + t1_rows), f32)
    wm1all = wm1all.at[:, :a].set(wm1x.T)
    wm1all = wm1all.at[:, a:a + s].set(wm1s.T)
    wm1all = wm1all.at[:, a + s].set(bm1f[0])
    wm1all = wm1all.at[:, xs_rows:xs_rows + 2 * t_dim].set(wcomb.T)

    weights = (
        wt1p.astype(bf16), bt1p,
        wm1all.astype(bf16),
        params["wm2"].T.astype(bf16), params["bm2"].T,
        params["wm3"].T.astype(bf16), params["bm3"].T,
        params["wf"].T.astype(bf16), params["bf"].T,
    )
    return time_fm, xs_aug, weights


def mlp_forward(params, x, time, state, t_dim=4, batch_tile=4096):
    """Pallas forward.

    Batch tiling: for B > 512 the batch splits into n_steps = max(2,
    ceil(B / batch_tile)) tiles of width round_up(ceil(B / n_steps), 128) —
    >= 2 steps keeps both v7x TensorCores busy and the padding waste small.
    Per-step VMEM is ~50 B/column (double-buffered), far below the 32 MiB
    scoped default on v5e/v6e/v7x; do NOT shrink tiles for v7x — only set
    vmem_limit_bytes if batch_tile is pushed past ~100k columns.
    """
    B, action_dim = x.shape
    time_fm, xs_aug, weights = _prepare(params, x, time, state, t_dim)

    if B <= 512:
        tb, bp = B, B                   # tiny batches: one block, no padding
    else:
        n_steps = max(2, pl.cdiv(B, batch_tile))
        tb = _round_up(pl.cdiv(B, n_steps), 128)
        bp = tb * n_steps
    if bp != B:
        pad = ((0, 0), (0, bp - B))
        time_fm = jnp.pad(time_fm, pad)
        xs_aug = jnp.pad(xs_aug, pad)

    def stream(arr):
        return pl.BlockSpec((arr.shape[0], tb), lambda i: (0, i))

    def resident(arr):
        return pl.BlockSpec(arr.shape, lambda i: (0, 0))

    out_fm = pl.pallas_call(
        _make_kernel(t_dim, _freqs(t_dim)),
        out_shape=jax.ShapeDtypeStruct((action_dim, bp), jnp.float32),
        grid=(bp // tb,),
        in_specs=[stream(time_fm), stream(xs_aug)]
                 + [resident(w) for w in weights],
        out_specs=pl.BlockSpec((action_dim, tb), lambda i: (0, i)),
        compiler_params=pltpu.CompilerParams(
            dimension_semantics=("parallel",)),
    )(time_fm, xs_aug, *weights)

    return out_fm[:, :B].T                                  # (B, action_dim)


def matched_reference(params, x, time, state, t_dim=4):
    """Pure-JAX mirror of the kernel math (same folding, same bf16 cast
    points) — tight structural-correctness check for the Pallas kernel."""
    f32, bf16 = jnp.float32, jnp.bfloat16
    time_fm, xs_aug, w = _prepare(params, x, time, state, t_dim)
    wt1, bt1, wm1all, wm2, bm2, wm3, bm3, wf, bf_ = w
    freqs = _freqs(t_dim)
    half = len(freqs)

    def mish(v):
        ev = jnp.exp(jnp.minimum(v, 30.0))
        num = ev * (ev + 2.0)
        return v * num / (num + 2.0)

    fcol = jnp.asarray(list(freqs) * 2, f32)[:, None]       # (t_dim, 1)
    arg = fcol * time_fm                                     # (t_dim, B)
    emb = jnp.where(jnp.arange(t_dim)[:, None] < half,
                    jnp.sin(arg), jnp.cos(arg))
    t1 = mish(jnp.dot(wt1, emb.astype(bf16),
                      preferred_element_type=f32) + bt1)
    stacked = jnp.concatenate([xs_aug, t1.astype(bf16)], axis=0)
    h = mish(jnp.dot(wm1all, stacked, preferred_element_type=f32))
    h = mish(jnp.dot(wm2, h.astype(bf16), preferred_element_type=f32) + bm2)
    h = mish(jnp.dot(wm3, h.astype(bf16), preferred_element_type=f32) + bm3)
    out = jnp.dot(wf, h.astype(bf16), preferred_element_type=f32) + bf_
    return out.T


def sinusoidal_pos_emb(time, dim):
    # matches the standard SinusoidalPosEmb used in bc_diffusion
    half_dim = dim // 2
    scale = math.log(10000.0) / (half_dim - 1)
    freqs = jnp.exp(jnp.arange(half_dim, dtype=jnp.float32) * -scale)
    emb = time[:, None].astype(jnp.float32) * freqs[None, :]
    return jnp.concatenate([jnp.sin(emb), jnp.cos(emb)], axis=-1)  # (B, dim)


def reference_forward(params, x, time, state, t_dim=4):
    # pure-JAX f32 reference of the PyTorch forward (exact module semantics)
    def mish(v):
        return v * jnp.tanh(jnp.log1p(jnp.exp(v)))

    emb = sinusoidal_pos_emb(time, t_dim)
    t = mish(emb @ params["wt1"] + params["bt1"]) @ params["wt2"] + params["bt2"]
    h = jnp.concatenate([x, t, state], axis=1)
    h = mish(h @ params["wm1"] + params["bm1"])
    h = mish(h @ params["wm2"] + params["bm2"])
    h = mish(h @ params["wm3"] + params["bm3"])
    return h @ params["wf"] + params["bf"]


def init_linear(key, fan_in, fan_out):
    # deterministic synthetic init (nn.Linear-style uniform ±1/sqrt(fan_in))
    kw, kb = jax.random.split(key)
    bound = 1.0 / math.sqrt(fan_in)
    w = jax.random.uniform(kw, (fan_in, fan_out), jnp.float32, -bound, bound)
    b = jax.random.uniform(kb, (1, fan_out), jnp.float32, -bound, bound)
    return w, b


def make_params(key, state_dim, action_dim, t_dim=4, hidden_dim=32):
    keys = jax.random.split(key, 6)
    wt1, bt1 = init_linear(keys[0], t_dim, 2 * t_dim)
    wt2, bt2 = init_linear(keys[1], 2 * t_dim, t_dim)
    input_dim = state_dim + action_dim + t_dim
    wm1, bm1 = init_linear(keys[2], input_dim, hidden_dim)
    wm2, bm2 = init_linear(keys[3], hidden_dim, hidden_dim)
    wm3, bm3 = init_linear(keys[4], hidden_dim, hidden_dim)
    wf, bf = init_linear(keys[5], hidden_dim, action_dim)
    return dict(
        wt1=wt1, bt1=bt1, wt2=wt2, bt2=bt2,
        wm1=wm1, bm1=bm1, wm2=wm2, bm2=bm2, wm3=wm3, bm3=bm3,
        wf=wf, bf=bf,
    )


if __name__ == "__main__":
    state_dim, action_dim, t_dim, hidden_dim = 11, 3, 4, 32

    key = jax.random.PRNGKey(0)
    kp, kd = jax.random.split(key)
    params = make_params(kp, state_dim, action_dim, t_dim, hidden_dim)

    # (B=8): single-block path; (B=1000, default): 2x512 grid (v7x megacore);
    # (B=1000, tile=256): exercises a 4-step grid (small tile only for testing).
    for B, tile in ((8, 4096), (1000, 4096), (1000, 256)):
        kx, ks, kt, kd = jax.random.split(kd, 4)
        x = jax.random.normal(kx, (B, action_dim), jnp.float32)
        state = jax.random.normal(ks, (B, state_dim), jnp.float32)
        time = jax.random.uniform(kt, (B,), jnp.float32, 0.0, 100.0)

        out = jax.block_until_ready(
            mlp_forward(params, x, time, state, t_dim, batch_tile=tile))
        assert out.shape == (B, action_dim)

        # tight check vs a pure-JAX mirror with identical folding / bf16 casts
        ref_m = matched_reference(params, x, time, state, t_dim)
        assert jnp.allclose(out, ref_m, atol=2e-2, rtol=2e-2), \
            "mismatch vs matched (bf16) reference"

        # sanity check vs exact f32 module semantics (bf16 MXU operands and
        # the trace-time folding consume part of the budget)
        ref = reference_forward(params, x, time, state, t_dim)
        assert jnp.allclose(out, ref, atol=1e-1, rtol=1e-1), \
            "mismatch vs f32 reference"

    print("KERNEL_OK")
</pallas_src>

<mosaic_0001>
module attributes {stable_mosaic.version = 11 : i64} {
  func.func @kernel(%arg0: i32, %arg1: memref<1x8xf32, #tpu.memory_space<vmem>>, %arg2: memref<16x8xbf16, #tpu.memory_space<vmem>>, %arg3: memref<16x4xbf16, #tpu.memory_space<vmem>>, %arg4: memref<16x1xf32, #tpu.memory_space<vmem>>, %arg5: memref<32x32xbf16, #tpu.memory_space<vmem>>, %arg6: memref<32x32xbf16, #tpu.memory_space<vmem>>, %arg7: memref<32x1xf32, #tpu.memory_space<vmem>>, %arg8: memref<32x32xbf16, #tpu.memory_space<vmem>>, %arg9: memref<32x1xf32, #tpu.memory_space<vmem>>, %arg10: memref<3x32xbf16, #tpu.memory_space<vmem>>, %arg11: memref<3x1xf32, #tpu.memory_space<vmem>>, %arg12: memref<3x8xf32, #tpu.memory_space<vmem>>) attributes {dimension_semantics = [#tpu.dimension_semantics<parallel>], iteration_bounds = array<i64: 1>, scalar_prefetch = 0 : i64, scratch_operands = 0 : i64, tpu.core_type = #tpu.core_type<tc>, window_params = [{transform_indices = @transform_0, window_bounds = array<i64: 1, 8>}, {transform_indices = @transform_1, window_bounds = array<i64: 16, 8>}, {pipeline_mode = #tpu.pipeline_mode<synchronous>, transform_indices = @transform_2, window_bounds = array<i64: 16, 4>}, {pipeline_mode = #tpu.pipeline_mode<synchronous>, transform_indices = @transform_3, window_bounds = array<i64: 16, 1>}, {pipeline_mode = #tpu.pipeline_mode<synchronous>, transform_indices = @transform_4, window_bounds = array<i64: 32, 32>}, {pipeline_mode = #tpu.pipeline_mode<synchronous>, transform_indices = @transform_5, window_bounds = array<i64: 32, 32>}, {pipeline_mode = #tpu.pipeline_mode<synchronous>, transform_indices = @transform_6, window_bounds = array<i64: 32, 1>}, {pipeline_mode = #tpu.pipeline_mode<synchronous>, transform_indices = @transform_7, window_bounds = array<i64: 32, 32>}, {pipeline_mode = #tpu.pipeline_mode<synchronous>, transform_indices = @transform_8, window_bounds = array<i64: 32, 1>}, {pipeline_mode = #tpu.pipeline_mode<synchronous>, transform_indices = @transform_9, window_bounds = array<i64: 3, 32>}, {pipeline_mode = #tpu.pipeline_mode<synchronous>, transform_indices = @transform_10, window_bounds = array<i64: 3, 1>}, {transform_indices = @transform_11, window_bounds = array<i64: 3, 8>}]} {
    %c0 = arith.constant 0 : index
    %c0_0 = arith.constant 0 : index
    %0 = vector.load %arg1[%c0, %c0_0] : memref<1x8xf32, #tpu.memory_space<vmem>>, vector<1x8xf32>
    %1 = tpu.iota {dimensions = array<i32: 0>} : vector<4x8xi32>
    %cst = arith.constant 1.000000e+00 : f32
    %2 = vector.broadcast %cst : f32 to vector<4x8xf32>
    %c2_i32 = arith.constant 2 : i32
    %c0_i32 = arith.constant 0 : i32
    %3 = arith.cmpi eq, %c2_i32, %c0_i32 : i32
    %c1_i32 = arith.constant 1 : i32
    %4 = arith.select %3, %c1_i32, %c2_i32 : i32
    %5 = vector.broadcast %4 : i32 to vector<4x8xi32>
    %6 = arith.remsi %1, %5 : vector<4x8xi32>
    %c0_i32_1 = arith.constant 0 : i32
    %7 = vector.broadcast %c0_i32_1 : i32 to vector<4x8xi32>
    %8 = arith.cmpi ne, %6, %7 : vector<4x8xi32>
    %c0_i32_2 = arith.constant 0 : i32
    %9 = vector.broadcast %c0_i32_2 : i32 to vector<4x8xi32>
    %10 = arith.cmpi slt, %6, %9 : vector<4x8xi32>
    %c0_i32_3 = arith.constant 0 : i32
    %11 = arith.cmpi slt, %4, %c0_i32_3 : i32
    %12 = vector.broadcast %11 : i1 to vector<4x8xi1>
    %13 = vector.broadcast %12 : vector<4x8xi1> to vector<4x8xi1>
    %14 = arith.xori %10, %13 : vector<4x8xi1>
    %15 = arith.andi %14, %8 : vector<4x8xi1>
    %16 = vector.broadcast %4 : i32 to vector<4x8xi32>
    %17 = arith.addi %6, %16 : vector<4x8xi32>
    %18 = arith.select %15, %17, %6 : vector<4x8xi1>, vector<4x8xi32>
    %c1_i32_4 = arith.constant 1 : i32
    %19 = vector.broadcast %c1_i32_4 : i32 to vector<4x8xi32>
    %20 = arith.cmpi eq, %18, %19 : vector<4x8xi32>
    %cst_5 = arith.constant 9.99999974E-5 : f32
    %21 = vector.broadcast %cst_5 : f32 to vector<4x8xf32>
    %22 = arith.select %20, %21, %2 : vector<4x8xi1>, vector<4x8xf32>
    %23 = vector.broadcast %0 : vector<1x8xf32> to vector<4x8xf32>
    %24 = arith.mulf %22, %23 : vector<4x8xf32>
    %c2_i32_6 = arith.constant 2 : i32
    %25 = vector.broadcast %c2_i32_6 : i32 to vector<4x8xi32>
    %26 = arith.cmpi slt, %1, %25 : vector<4x8xi32>
    %27 = math.sin %24 : vector<4x8xf32>
    %28 = math.cos %24 : vector<4x8xf32>
    %29 = arith.select %26, %27, %28 : vector<4x8xi1>, vector<4x8xf32>
    %c0_7 = arith.constant 0 : index
    %c0_8 = arith.constant 0 : index
    %30 = vector.load %arg3[%c0_7, %c0_8] : memref<16x4xbf16, #tpu.memory_space<vmem>>, vector<16x4xbf16>
    %31 = arith.truncf %29 : vector<4x8xf32> to vector<4x8xbf16>
    %cst_9 = arith.constant dense<0.000000e+00> : vector<16x8xf32>
    %32 = tpu.matmul %30, %31, %cst_9 {dimension_numbers = #tpu.dot_dimension_numbers<[1], [0], [0], [1], [0, 0, 1, 1], [], []>} : vector<16x4xbf16>, vector<4x8xbf16>, vector<16x8xf32> -> vector<16x8xf32>
    %c0_10 = arith.constant 0 : index
    %c0_11 = arith.constant 0 : index
    %33 = vector.load %arg4[%c0_10, %c0_11] : memref<16x1xf32, #tpu.memory_space<vmem>>, vector<16x1xf32>
    %34 = vector.broadcast %33 : vector<16x1xf32> to vector<16x8xf32>
    %35 = arith.addf %32, %34 : vector<16x8xf32>
    %cst_12 = arith.constant 3.000000e+01 : f32
    %36 = vector.broadcast %cst_12 : f32 to vector<16x8xf32>
    %37 = arith.minimumf %35, %36 : vector<16x8xf32>
    %38 = math.exp %37 : vector<16x8xf32>
    %cst_13 = arith.constant 2.000000e+00 : f32
    %39 = vector.broadcast %cst_13 : f32 to vector<16x8xf32>
    %40 = arith.addf %38, %39 : vector<16x8xf32>
    %41 = arith.mulf %38, %40 : vector<16x8xf32>
    %42 = arith.mulf %35, %41 : vector<16x8xf32>
    %cst_14 = arith.constant 2.000000e+00 : f32
    %43 = vector.broadcast %cst_14 : f32 to vector<16x8xf32>
    %44 = arith.addf %41, %43 : vector<16x8xf32>
    %45 = tpu.reciprocal %44 : vector<16x8xf32> -> vector<16x8xf32>
    %46 = arith.mulf %42, %45 : vector<16x8xf32>
    %c0_15 = arith.constant 0 : index
    %c0_16 = arith.constant 0 : index
    %47 = vector.load %arg2[%c0_15, %c0_16] : memref<16x8xbf16, #tpu.memory_space<vmem>>, vector<16x8xbf16>
    %48 = arith.truncf %46 : vector<16x8xf32> to vector<16x8xbf16>
    %49 = tpu.concatenate %47, %48 in 0 : vector<16x8xbf16>, vector<16x8xbf16> -> vector<32x8xbf16>
    %c0_17 = arith.constant 0 : index
    %c0_18 = arith.constant 0 : index
    %50 = vector.load %arg5[%c0_17, %c0_18] : memref<32x32xbf16, #tpu.memory_space<vmem>>, vector<32x32xbf16>
    %cst_19 = arith.constant dense<0.000000e+00> : vector<32x8xf32>
    %51 = tpu.matmul %50, %49, %cst_19 {dimension_numbers = #tpu.dot_dimension_numbers<[1], [0], [0], [1], [0, 0, 1, 1], [], []>} : vector<32x32xbf16>, vector<32x8xbf16>, vector<32x8xf32> -> vector<32x8xf32>
    %cst_20 = arith.constant 3.000000e+01 : f32
    %52 = vector.broadcast %cst_20 : f32 to vector<32x8xf32>
    %53 = arith.minimumf %51, %52 : vector<32x8xf32>
    %54 = math.exp %53 : vector<32x8xf32>
    %cst_21 = arith.constant 2.000000e+00 : f32
    %55 = vector.broadcast %cst_21 : f32 to vector<32x8xf32>
    %56 = arith.addf %54, %55 : vector<32x8xf32>
    %57 = arith.mulf %54, %56 : vector<32x8xf32>
    %58 = arith.mulf %51, %57 : vector<32x8xf32>
    %cst_22 = arith.constant 2.000000e+00 : f32
    %59 = vector.broadcast %cst_22 : f32 to vector<32x8xf32>
    %60 = arith.addf %57, %59 : vector<32x8xf32>
    %61 = tpu.reciprocal %60 : vector<32x8xf32> -> vector<32x8xf32>
    %62 = arith.mulf %58, %61 : vector<32x8xf32>
    %c0_23 = arith.constant 0 : index
    %c0_24 = arith.constant 0 : index
    %63 = vector.load %arg6[%c0_23, %c0_24] : memref<32x32xbf16, #tpu.memory_space<vmem>>, vector<32x32xbf16>
    %64 = arith.truncf %62 : vector<32x8xf32> to vector<32x8xbf16>
    %cst_25 = arith.constant dense<0.000000e+00> : vector<32x8xf32>
    %65 = tpu.matmul %63, %64, %cst_25 {dimension_numbers = #tpu.dot_dimension_numbers<[1], [0], [0], [1], [0, 0, 1, 1], [], []>} : vector<32x32xbf16>, vector<32x8xbf16>, vector<32x8xf32> -> vector<32x8xf32>
    %c0_26 = arith.constant 0 : index
    %c0_27 = arith.constant 0 : index
    %66 = vector.load %arg7[%c0_26, %c0_27] : memref<32x1xf32, #tpu.memory_space<vmem>>, vector<32x1xf32>
    %67 = vector.broadcast %66 : vector<32x1xf32> to vector<32x8xf32>
    %68 = arith.addf %65, %67 : vector<32x8xf32>
    %cst_28 = arith.constant 3.000000e+01 : f32
    %69 = vector.broadcast %cst_28 : f32 to vector<32x8xf32>
    %70 = arith.minimumf %68, %69 : vector<32x8xf32>
    %71 = math.exp %70 : vector<32x8xf32>
    %cst_29 = arith.constant 2.000000e+00 : f32
    %72 = vector.broadcast %cst_29 : f32 to vector<32x8xf32>
    %73 = arith.addf %71, %72 : vector<32x8xf32>
    %74 = arith.mulf %71, %73 : vector<32x8xf32>
    %75 = arith.mulf %68, %74 : vector<32x8xf32>
    %cst_30 = arith.constant 2.000000e+00 : f32
    %76 = vector.broadcast %cst_30 : f32 to vector<32x8xf32>
    %77 = arith.addf %74, %76 : vector<32x8xf32>
    %78 = tpu.reciprocal %77 : vector<32x8xf32> -> vector<32x8xf32>
    %79 = arith.mulf %75, %78 : vector<32x8xf32>
    %c0_31 = arith.constant 0 : index
    %c0_32 = arith.constant 0 : index
    %80 = vector.load %arg8[%c0_31, %c0_32] : memref<32x32xbf16, #tpu.memory_space<vmem>>, vector<32x32xbf16>
    %81 = arith.truncf %79 : vector<32x8xf32> to vector<32x8xbf16>
    %cst_33 = arith.constant dense<0.000000e+00> : vector<32x8xf32>
    %82 = tpu.matmul %80, %81, %cst_33 {dimension_numbers = #tpu.dot_dimension_numbers<[1], [0], [0], [1], [0, 0, 1, 1], [], []>} : vector<32x32xbf16>, vector<32x8xbf16>, vector<32x8xf32> -> vector<32x8xf32>
    %c0_34 = arith.constant 0 : index
    %c0_35 = arith.constant 0 : index
    %83 = vector.load %arg9[%c0_34, %c0_35] : memref<32x1xf32, #tpu.memory_space<vmem>>, vector<32x1xf32>
    %84 = vector.broadcast %83 : vector<32x1xf32> to vector<32x8xf32>
    %85 = arith.addf %82, %84 : vector<32x8xf32>
    %cst_36 = arith.constant 3.000000e+01 : f32
    %86 = vector.broadcast %cst_36 : f32 to vector<32x8xf32>
    %87 = arith.minimumf %85, %86 : vector<32x8xf32>
    %88 = math.exp %87 : vector<32x8xf32>
    %cst_37 = arith.constant 2.000000e+00 : f32
    %89 = vector.broadcast %cst_37 : f32 to vector<32x8xf32>
    %90 = arith.addf %88, %89 : vector<32x8xf32>
    %91 = arith.mulf %88, %90 : vector<32x8xf32>
    %92 = arith.mulf %85, %91 : vector<32x8xf32>
    %cst_38 = arith.constant 2.000000e+00 : f32
    %93 = vector.broadcast %cst_38 : f32 to vector<32x8xf32>
    %94 = arith.addf %91, %93 : vector<32x8xf32>
    %95 = tpu.reciprocal %94 : vector<32x8xf32> -> vector<32x8xf32>
    %96 = arith.mulf %92, %95 : vector<32x8xf32>
    %c0_39 = arith.constant 0 : index
    %c0_40 = arith.constant 0 : index
    %97 = vector.load %arg10[%c0_39, %c0_40] : memref<3x32xbf16, #tpu.memory_space<vmem>>, vector<3x32xbf16>
    %98 = arith.truncf %96 : vector<32x8xf32> to vector<32x8xbf16>
    %cst_41 = arith.constant dense<0.000000e+00> : vector<3x8xf32>
    %99 = tpu.matmul %97, %98, %cst_41 {dimension_numbers = #tpu.dot_dimension_numbers<[1], [0], [0], [1], [0, 0, 1, 1], [], []>} : vector<3x32xbf16>, vector<32x8xbf16>, vector<3x8xf32> -> vector<3x8xf32>
    %c0_42 = arith.constant 0 : index
    %c0_43 = arith.constant 0 : index
    %100 = vector.load %arg11[%c0_42, %c0_43] : memref<3x1xf32, #tpu.memory_space<vmem>>, vector<3x1xf32>
    %101 = vector.broadcast %100 : vector<3x1xf32> to vector<3x8xf32>
    %102 = arith.addf %99, %101 : vector<3x8xf32>
    %c0_44 = arith.constant 0 : index
    %c0_45 = arith.constant 0 : index
    %103 = vector.load %arg12[%c0_44, %c0_45] : memref<3x8xf32, #tpu.memory_space<vmem>>, vector<3x8xf32>
    tpu.vector_store %arg12[%c0_44, %c0_45], %102 {strides = array<i32>} : memref<3x8xf32, #tpu.memory_space<vmem>>, vector<3x8xf32>,
    return
  }
  func.func @transform_0(%arg0: i32) -> (i32, i32) {
    %c0_i32 = arith.constant 0 : i32
    %c0_i32_0 = arith.constant 0 : i32
    return %c0_i32, %arg0 : i32, i32
  }
  func.func @transform_1(%arg0: i32) -> (i32, i32) {
    %c0_i32 = arith.constant 0 : i32
    %c0_i32_0 = arith.constant 0 : i32
    return %c0_i32, %arg0 : i32, i32
  }
  func.func @transform_2(%arg0: i32) -> (i32, i32) {
    %c0_i32 = arith.constant 0 : i32
    %c0_i32_0 = arith.constant 0 : i32
    %c0_i32_1 = arith.constant 0 : i32
    return %c0_i32, %c0_i32_0 : i32, i32
  }
  func.func @transform_3(%arg0: i32) -> (i32, i32) {
    %c0_i32 = arith.constant 0 : i32
    %c0_i32_0 = arith.constant 0 : i32
    %c0_i32_1 = arith.constant 0 : i32
    return %c0_i32, %c0_i32_0 : i32, i32
  }
  func.func @transform_4(%arg0: i32) -> (i32, i32) {
    %c0_i32 = arith.constant 0 : i32
    %c0_i32_0 = arith.constant 0 : i32
    %c0_i32_1 = arith.constant 0 : i32
    return %c0_i32, %c0_i32_0 : i32, i32
  }
  func.func @transform_5(%arg0: i32) -> (i32, i32) {
    %c0_i32 = arith.constant 0 : i32
    %c0_i32_0 = arith.constant 0 : i32
    %c0_i32_1 = arith.constant 0 : i32
    return %c0_i32, %c0_i32_0 : i32, i32
  }
  func.func @transform_6(%arg0: i32) -> (i32, i32) {
    %c0_i32 = arith.constant 0 : i32
    %c0_i32_0 = arith.constant 0 : i32
    %c0_i32_1 = arith.constant 0 : i32
    return %c0_i32, %c0_i32_0 : i32, i32
  }
  func.func @transform_7(%arg0: i32) -> (i32, i32) {
    %c0_i32 = arith.constant 0 : i32
    %c0_i32_0 = arith.constant 0 : i32
    %c0_i32_1 = arith.constant 0 : i32
    return %c0_i32, %c0_i32_0 : i32, i32
  }
  func.func @transform_8(%arg0: i32) -> (i32, i32) {
    %c0_i32 = arith.constant 0 : i32
    %c0_i32_0 = arith.constant 0 : i32
    %c0_i32_1 = arith.constant 0 : i32
    return %c0_i32, %c0_i32_0 : i32, i32
  }
  func.func @transform_9(%arg0: i32) -> (i32, i32) {
    %c0_i32 = arith.constant 0 : i32
    %c0_i32_0 = arith.constant 0 : i32
    %c0_i32_1 = arith.constant 0 : i32
    return %c0_i32, %c0_i32_0 : i32, i32
  }
  func.func @transform_10(%arg0: i32) -> (i32, i32) {
    %c0_i32 = arith.constant 0 : i32
    %c0_i32_0 = arith.constant 0 : i32
    %c0_i32_1 = arith.constant 0 : i32
    return %c0_i32, %c0_i32_0 : i32, i32
  }
  func.func @transform_11(%arg0: i32) -> (i32, i32) {
    %c0_i32 = arith.constant 0 : i32
    %c0_i32_0 = arith.constant 0 : i32
    return %c0_i32, %arg0 : i32, i32
  }
}

</mosaic_0001>

<llo_original>
// kernel: tpu_custom_call.1
$region0: #{tpu_custom_call.1}
  #allocation0 [shape = 'u32[]', space=smem, size = 0x4, offset = 0x4, fixed_abs, tag = 'smem constant byte address 0x4 - core index']
  #allocation1 [shape = 'u32[144,128]{1,0:T(1,128)}', space=vmem, size = 0x12000, scoped, tag = 'internal scratch']
  %s0 = inlined_call_operand.vmem [shape: f32[1,8], index: 0, kind: input, shape index: {}]
  %s1 = inlined_call_operand.vmem [shape: bf16[16,8], index: 1, kind: input, shape index: {}]
  %s2 = inlined_call_operand.vmem [shape: bf16[16,4], index: 2, kind: input, shape index: {}]
  %s3 = inlined_call_operand.vmem [shape: f32[16,1], index: 3, kind: input, shape index: {}]
  %s4 = inlined_call_operand.vmem [shape: bf16[32,32], index: 4, kind: input, shape index: {}]
  %s5 = inlined_call_operand.vmem [shape: bf16[32,32], index: 5, kind: input, shape index: {}]
  %s6 = inlined_call_operand.vmem [shape: f32[32,1], index: 6, kind: input, shape index: {}]
  %s7 = inlined_call_operand.vmem [shape: bf16[32,32], index: 7, kind: input, shape index: {}]
  %s8 = inlined_call_operand.vmem [shape: f32[32,1], index: 8, kind: input, shape index: {}]
  %s9 = inlined_call_operand.vmem [shape: bf16[3,32], index: 9, kind: input, shape index: {}]
  %s10 = inlined_call_operand.vmem [shape: f32[3,1], index: 10, kind: input, shape index: {}]
  %s11 = inlined_call_operand.hbm [shape: f32[3,8], index: 11, kind: output, shape index: {}]
  %s12 = sld [smem:[#allocation0]]
  $region54: #{tpu_custom_call.1} parent=0
    _
  %s14 = ssub.s32 1, %s12
  %s15 = scalar_select 0, %s14, %s12
  $region1: #{tpu_custom_call.1} parent=0
    #allocation2 [shape = 'u8[2048]{0}', space=vmem, size = 0x800, scoped, tag = 'output window, operand 0, single buffered']
    #allocation3 [shape = 's32[1]{0}', space=sflag, size = 0x4, scoped, tag = 'scoped memory for tpu_custom_call.1']
    %16 = vsyncpa [#allocation3], 0
    // Predicated region
    $region2: #{tpu_custom_call.1} parent=1 // pred_check
      _
    $region3: #{tpu_custom_call.1} parent=1 // pred_check_branch
      %18 = sbr.rel (0) target = $region5
    $region4: #{tpu_custom_call.1} parent=1 // pred_region
      _
    $region5: #{tpu_custom_call.1} parent=1 // pred_fallthru
      _
    // Predicated region
    $region6: #{tpu_custom_call.1} parent=1 // pred_check
      _
    $region7: #{tpu_custom_call.1} parent=1 // pred_check_branch
      %20 = sbr.rel (0) target = $region9
    $region8: #{tpu_custom_call.1} parent=1 // pred_region
      _
    $region9: #{tpu_custom_call.1} parent=1 // pred_fallthru
      _
    // Predicated region
    $region10: #{tpu_custom_call.1} parent=1 // pred_check
      _
    $region11: #{tpu_custom_call.1} parent=1 // pred_check_branch
      %22 = sbr.rel (0) target = $region13
    $region12: #{tpu_custom_call.1} parent=1 // pred_region
      _
    $region13: #{tpu_custom_call.1} parent=1 // pred_fallthru
      _
    // Predicated region
    $region14: #{tpu_custom_call.1} parent=1 // pred_check
      _
    $region15: #{tpu_custom_call.1} parent=1 // pred_check_branch
      %24 = sbr.rel (0) target = $region17
    $region16: #{tpu_custom_call.1} parent=1 // pred_region
      _
    $region17: #{tpu_custom_call.1} parent=1 // pred_fallthru
      _
    // Predicated region
    $region18: #{tpu_custom_call.1} parent=1 // pred_check
      _
    $region19: #{tpu_custom_call.1} parent=1 // pred_check_branch
      %26 = sbr.rel (0) target = $region21
    $region20: #{tpu_custom_call.1} parent=1 // pred_region
      _
    $region21: #{tpu_custom_call.1} parent=1 // pred_fallthru
      _
    // Predicated region
    $region22: #{tpu_custom_call.1} parent=1 // pred_check
      _
    $region23: #{tpu_custom_call.1} parent=1 // pred_check_branch
      %28 = sbr.rel (0) target = $region25
    $region24: #{tpu_custom_call.1} parent=1 // pred_region
      _
    $region25: #{tpu_custom_call.1} parent=1 // pred_fallthru
      _
    // Predicated region
    $region26: #{tpu_custom_call.1} parent=1 // pred_check
      _
    $region27: #{tpu_custom_call.1} parent=1 // pred_check_branch
      %30 = sbr.rel (0) target = $region29
    $region28: #{tpu_custom_call.1} parent=1 // pred_region
      _
    $region29: #{tpu_custom_call.1} parent=1 // pred_fallthru
      _
    // Predicated region
    $region30: #{tpu_custom_call.1} parent=1 // pred_check
      _
    $region31: #{tpu_custom_call.1} parent=1 // pred_check_branch
      %32 = sbr.rel (0) target = $region33
    $region32: #{tpu_custom_call.1} parent=1 // pred_region
      _
    $region33: #{tpu_custom_call.1} parent=1 // pred_fallthru
      _
    // Predicated region
    $region34: #{tpu_custom_call.1} parent=1 // pred_check
      _
    $region35: #{tpu_custom_call.1} parent=1 // pred_check_branch
      %34 = sbr.rel (0) target = $region37
    $region36: #{tpu_custom_call.1} parent=1 // pred_region
      _
    $region37: #{tpu_custom_call.1} parent=1 // pred_fallthru
      _
    // Predicated region
    $region38: #{tpu_custom_call.1} parent=1 // pred_check
      _
    $region39: #{tpu_custom_call.1} parent=1 // pred_check_branch
      %36 = sbr.rel (0) target = $region41
    $region40: #{tpu_custom_call.1} parent=1 // pred_region
      _
    $region41: #{tpu_custom_call.1} parent=1 // pred_fallthru
      _
    // Predicated region
    $region42: #{tpu_custom_call.1} parent=1 // pred_check
      _
    $region43: #{tpu_custom_call.1} parent=1 // pred_check_branch
      %38 = sbr.rel (0) target = $region45
    $region44: #{tpu_custom_call.1} parent=1 // pred_region
      _
    $region45: #{tpu_custom_call.1} parent=1 // pred_fallthru
      _
    %v40 = vld [vmem:[%s0] sm:$0x1]
    %v41 = vlaneseq
    %v42 = vshrl.u32 %v41, 7
    %vm43 = vcmp.lt.s32.totalorder %v42, 0
    %v44 = vsub.s32 0, %v42
    %v45 = vsel %vm43, %v44, %v42
    %v46 = vshrl.u32 %v45, 1
    %v47 = vand.u32 %v45, 1
    %v48 = vsub.s32 0, %v47
    %v49 = vsel %vm43, %v48, %v47
    %vm50 = vcmp.ne.s32.totalorder %v49, 0
    %vm51 = vcmp.lt.s32.totalorder %v49, 0
    %vm52 = vmand %vm51, %vm50
    %v53 = vadd.s32 %v49, 2
    %v54 = vsel %vm52, %v53, %v49
    %vm55 = vcmp.eq.s32.totalorder %v54, 1
    %v56 = vsel %vm55, 0.0001, 1.0
    %v58 = vlaneseq
    %v59 = vshrl.u32 %v58, 7
    %v60 = vsub.s32 0, %v59
    %v61 = vrot.slane %v40, %v60
    %v63 = vmul.f32 %v56, %v61
    %vm64 = vcmp.lt.s32.totalorder %v42, 2
    %v65 = vand.u32 2147483647, %v63
    %vm66 = vcmp.le.f32.partialorder %v65, 0.7853982
    %vm67 = vcmp.lt.s32.totalorder %v63, 0
    %v68 = vand.u32 %v63, 2139095040
    %v69 = vshrl.u32 %v68, 23
    %v70 = vsub.s32 %v69, 127
    %v71 = vand.u32 2147483647, %v63
    %v72 = vand.u32 %v71, 8388607
    %v73 = vor.u32 %v72, 8388608
    %v74 = vsub.s32 0, %v73
    %v75 = vadd.s32 %v70, 1
    %vm76 = vcmp.gt.s32.totalorder %v75, 0
    %v77 = vsel %vm76, %v75, 0
    %v78 = vshrl.u32 %v77, 5
    %v79 = vand.u32 %v77, 31
    %v80 = vsub.s32 32, %v79
    %v81 = vshrl.u32 683565275, %v80
    %v82 = vshll.u32 683565275, %v79
    %v83 = vshrl.u32 2475754826, %v80
    %v84 = vor.u32 %v82, %v83
    %v85 = vshll.u32 2475754826, %v79
    %v86 = vshrl.u32 2131351028, %v80
    %v87 = vor.u32 %v85, %v86
    %v88 = vshll.u32 2131351028, %v79
    %v89 = vshrl.u32 2102212464, %v80
    %v90 = vor.u32 %v88, %v89
    %v91 = vshll.u32 2102212464, %v79
    %v92 = vshrl.u32 920167782, %v80
    %v93 = vor.u32 %v91, %v92
    %v94 = vshll.u32 920167782, %v79
    %v95 = vshrl.u32 1326507024, %v80
    %v96 = vor.u32 %v94, %v95
    %vm97 = vcmp.lt.s32.totalorder %v78, 1
    %vm98 = vcmp.lt.s32.totalorder %v78, 2
    %vm99 = vcmp.lt.s32.totalorder %v78, 3
    %vm100 = vcmp.lt.s32.totalorder %v78, 4
    %v101 = vsel %vm97, %v81, %v84
    %v102 = vsel %vm100, %v90, 2102212464
    %v103 = vsel %vm99, %v87, %v102
    %v104 = vsel %vm98, %v101, %v103
    %v105 = vsel %vm97, %v84, %v87
    %v106 = vsel %vm100, %v93, 920167782
    %v107 = vsel %vm99, %v90, %v106
    %v108 = vsel %vm98, %v105, %v107
    %v109 = vsel %vm97, %v87, %v90
    %v110 = vsel %vm100, %v96, 1326507024
    %v111 = vsel %vm99, %v93, %v110
    %v112 = vsel %vm98, %v109, %v111
    %v113 = vshll.u32 %v73, 8
    %v114 = vmul.u32.u64.compose %v113, %v112
    %v115 = vextract.low.u32 %v114
    %v116 = vextract.high.u32 %v114
    %v117 = vmul.u32.u64.compose %v113, %v108
    %v118 = vextract.low.u32 %v117
    %v119 = vextract.high.u32 %v117
    %v120 = vmul.u32 %v113, %v104
    %v121 = vadd.s32 %v116, %v118
    %vm122 = vc.u32 %v116, %v118
    %v123 = vadd.s32 %v119, 1
    %v124 = vsel %vm122, %v123, %v119
    %v125 = vadd.s32 %v120, %v124
    %v126 = vadd.s32 %v125, 536870912
    %v127 = vshrl.u32 %v126, 30
    %v128 = vshll.u32 %v127, 30
    %v129 = vsub.s32 %v125, %v128
    %vm130 = vcmp.lt.s32.totalorder %v129, 0
    %v131 = vsub.s32 0, %v129
    %v132 = vsel %vm130, %v131, %v129
    %v133 = vclz %v132
    %v134 = vsub.s32 %v133, 2
    %vm135 = vcmp.gt.s32.totalorder 0, %v134
    %v136 = vsel %vm135, 0, %v134
    %v137 = vsub.s32 32, %v136
    %v138 = vshll.u32 %v129, %v136
    %v139 = vshrl.u32 %v121, %v137
    %v140 = vor.u32 %v138, %v139
    %v141 = vsub.s32 4294967266, %v136
    %v142 = vadd.s32 %v141, 127
    %v143 = vshll.u32 %v142, 23
    %v144 = vor.u32 4788187, %v143
    %v145 = vand.u32 2147483647, %v144
    %v147 = vcvt.s32.f32 %v140
    %v148 = vmul.f32 %v147, %v145
    %v149 = vxor.u32 %v148, 2147483648
    %v150 = vsel %vm67, %v149, %v148
    %v151 = vsub.s32 4, %v127
    %v152 = vsel %vm67, %v151, %v127
    %v153 = vsel %vm66, %v63, %v150
    %v154 = vsel %vm66, 0, %v152
    %v155 = vcosq.f32.pop %v153
    %v156 = vsinq.f32.pop %v153
    %vm157 = vweird.f32 %v63
    %v158 = vadd.s32 %v154, 3
    %v159 = vand.u32 %v158, 3
    %vm160 = vcmp.lt.s32.totalorder %v159, 2
    %vm161 = vcmp.eq.s32.totalorder %v159, 0
    %v162 = vxor.u32 %v156, 2147483648
    %v163 = vsel %vm161, %v155, %v162
    %vm164 = vcmp.eq.s32.totalorder %v159, 2
    %v165 = vxor.u32 %v155, 2147483648
    %v166 = vsel %vm164, %v165, %v156
    %v167 = vsel %vm160, %v163, %v166
    %v168 = vsel %vm157, nan, %v167
    %v169 = vand.u32 2147483647, %v63
    %vm170 = vcmp.le.f32.partialorder %v169, 0.7853982
    %vm171 = vcmp.lt.s32.totalorder %v63, 0
    %v172 = vand.u32 %v63, 2139095040
    %v173 = vshrl.u32 %v172, 23
    %v174 = vsub.s32 %v173, 127
    %v175 = vand.u32 2147483647, %v63
    %v176 = vand.u32 %v175, 8388607
    %v177 = vor.u32 %v176, 8388608
    %v178 = vsub.s32 0, %v177
    %v179 = vadd.s32 %v174, 1
    %vm180 = vcmp.gt.s32.totalorder %v179, 0
    %v181 = vsel %vm180, %v179, 0
    %v182 = vshrl.u32 %v181, 5
    %v183 = vand.u32 %v181, 31
    %v184 = vsub.s32 32, %v183
    %v185 = vshrl.u32 683565275, %v184
    %v186 = vshll.u32 683565275, %v183
    %v187 = vshrl.u32 2475754826, %v184
    %v188 = vor.u32 %v186, %v187
    %v189 = vshll.u32 2475754826, %v183
    %v190 = vshrl.u32 2131351028, %v184
    %v191 = vor.u32 %v189, %v190
    %v192 = vshll.u32 2131351028, %v183
    %v193 = vshrl.u32 2102212464, %v184
    %v194 = vor.u32 %v192, %v193
    %v195 = vshll.u32 2102212464, %v183
    %v196 = vshrl.u32 920167782, %v184
    %v197 = vor.u32 %v195, %v196
    %v198 = vshll.u32 920167782, %v183
    %v199 = vshrl.u32 1326507024, %v184
    %v200 = vor.u32 %v198, %v199
    %vm201 = vcmp.lt.s32.totalorder %v182, 1
    %vm202 = vcmp.lt.s32.totalorder %v182, 2
    %vm203 = vcmp.lt.s32.totalorder %v182, 3
    %vm204 = vcmp.lt.s32.totalorder %v182, 4
    %v205 = vsel %vm201, %v185, %v188
    %v206 = vsel %vm204, %v194, 2102212464
    %v207 = vsel %vm203, %v191, %v206
    %v208 = vsel %vm202, %v205, %v207
    %v209 = vsel %vm201, %v188, %v191
    %v210 = vsel %vm204, %v197, 920167782
    %v211 = vsel %vm203, %v194, %v210
    %v212 = vsel %vm202, %v209, %v211
    %v213 = vsel %vm201, %v191, %v194
    %v214 = vsel %vm204, %v200, 1326507024
    %v215 = vsel %vm203, %v197, %v214
    %v216 = vsel %vm202, %v213, %v215
    %v217 = vshll.u32 %v177, 8
    %v218 = vmul.u32.u64.compose %v217, %v216
    %v219 = vextract.low.u32 %v218
    %v220 = vextract.high.u32 %v218
    %v221 = vmul.u32.u64.compose %v217, %v212
    %v222 = vextract.low.u32 %v221
    %v223 = vextract.high.u32 %v221
    %v224 = vmul.u32 %v217, %v208
    %v225 = vadd.s32 %v220, %v222
    %vm226 = vc.u32 %v220, %v222
    %v227 = vadd.s32 %v223, 1
    %v228 = vsel %vm226, %v227, %v223
    %v229 = vadd.s32 %v224, %v228
    %v230 = vadd.s32 %v229, 536870912
    %v231 = vshrl.u32 %v230, 30
    %v232 = vshll.u32 %v231, 30
    %v233 = vsub.s32 %v229, %v232
    %vm234 = vcmp.lt.s32.totalorder %v233, 0
    %v235 = vsub.s32 0, %v233
    %v236 = vsel %vm234, %v235, %v233
    %v237 = vclz %v236
    %v238 = vsub.s32 %v237, 2
    %vm239 = vcmp.gt.s32.totalorder 0, %v238
    %v240 = vsel %vm239, 0, %v238
    %v241 = vsub.s32 32, %v240
    %v242 = vshll.u32 %v233, %v240
    %v243 = vshrl.u32 %v225, %v241
    %v244 = vor.u32 %v242, %v243
    %v245 = vsub.s32 4294967266, %v240
    %v246 = vadd.s32 %v245, 127
    %v247 = vshll.u32 %v246, 23
    %v248 = vor.u32 4788187, %v247
    %v249 = vand.u32 2147483647, %v248
    %v251 = vcvt.s32.f32 %v244
    %v252 = vmul.f32 %v251, %v249
    %v253 = vxor.u32 %v252, 2147483648
    %v254 = vsel %vm171, %v253, %v252
    %v255 = vsub.s32 4, %v231
    %v256 = vsel %vm171, %v255, %v231
    %v257 = vsel %vm170, %v63, %v254
    %v258 = vsel %vm170, 0, %v256
    %v259 = vcosq.f32.pop %v257
    %v260 = vsinq.f32.pop %v257
    %vm261 = vweird.f32 %v63
    %v262 = vand.u32 %v258, 3
    %vm263 = vcmp.lt.s32.totalorder %v262, 2
    %vm264 = vcmp.eq.s32.totalorder %v262, 0
    %v265 = vxor.u32 %v260, 2147483648
    %v266 = vsel %vm264, %v259, %v265
    %vm267 = vcmp.eq.s32.totalorder %v262, 2
    %v268 = vxor.u32 %v259, 2147483648
    %v269 = vsel %vm267, %v268, %v260
    %v270 = vsel %vm263, %v266, %v269
    %v271 = vsel %vm261, nan, %v270
    %v272 = vsel %vm64, %v168, %v271
    %v273 = vld [vmem:[%s2] sm:$0xf]
    %v274 = vld [vmem:[%s2 + $0x4] sm:$0xf]
    %v275 = vpack.c.bf16 %v272, %v272
    %v276 = vld [vmem:[%s3] sm:$0xff]
    %v277 = vld [vmem:[%s3 + $0x8] sm:$0xff]
    %279 = vset.pattern.permute.xlu0 0
    %280 = vperm.xlu0 %279, %v276
    %v281 = vpop.permute.xlu0 %280
    %284 = vset.pattern.permute.xlu0 0
    %285 = vperm.xlu0 %284, %v277
    %v286 = vpop.permute.xlu0 %285
    %v290 = vunpack.c.l.b16 %v273
    %v291 = vunpack.c.l.b16 %v274
    %v292 = vpack.c.b16 %v291, %v290
    %vm293 = vcmask 31744
    %v295 = vsel %vm293, %v292, 0
    %vm297 = vcmask 1041408
    %v299 = vsel %vm297, %v275, 0
    %301 = vmatprep.subr.bf16.mxu0 0
    %302 = vmatpush1.bf16.msra.mxu0 0
    %303 = vmatprep.subr.bf16.mxu0 0
    %304 = vmatpush1.bf16.msra.mxu0 0
    %305 = vmatprep.subr.bf16.mxu0 0
    %306 = vmatpush1.bf16.msra.mxu0 0
    %307 = vmatprep.subr.bf16.mxu0 0
    %308 = vmatpush1.bf16.msra.mxu0 0
    %309 = vmatprep.subr.bf16.mxu0 0
    %310 = vmatpush1.bf16.msra.mxu0 0
    %311 = vmatprep.subr.bf16.mxu0 0
    %312 = vmatpush1.bf16.msra.mxu0 0
    %313 = vmatprep.subr.bf16.mxu0 0
    %314 = vmatpush1.bf16.msra.mxu0 0
    %315 = vmatprep.subr.bf16.mxu0 0
    %316 = vmatpush1.bf16.msra.mxu0 %v299
    %317 = vmatprep.subr.bf16.mxu0 0
    %318 = vmatpush2.bf16.msra.mxu0 0
    %319 = vmatprep.subr.bf16.mxu0 0
    %320 = vmatpush2.bf16.msra.mxu0 0
    %321 = vmatprep.subr.bf16.mxu0 0
    %322 = vmatpush2.bf16.msra.mxu0 0
    %323 = vmatprep.subr.bf16.mxu0 0
    %324 = vmatpush2.bf16.msra.mxu0 0
    %325 = vmatprep.subr.bf16.mxu0 0
    %326 = vmatpush2.bf16.msra.mxu0 0
    %327 = vmatprep.subr.bf16.mxu0 0
    %328 = vmatpush2.bf16.msra.mxu0 0
    %329 = vmatprep.subr.bf16.mxu0 0
    %330 = vmatpush2.bf16.msra.mxu0 0
    %331 = vmatprep.subr.bf16.mxu0 0
    %332 = vmatpush2.bf16.msra.mxu0 0
    %333 = vmatprep.mubr.bf16.mxu0 0
    %334 = vmatmul.mubr.bf16.gmra.mxu0 %v295
    %v335 = vpop.f32.mrf.mxu0
    %v336 = vadd.f32 %v281, %v335
    %v337 = vpop.f32.mrf.mxu0
    %v338 = vpop.f32.mrf.mxu0
    %v339 = vadd.f32 %v286, %v338
    %v340 = vpop.f32.mrf.mxu0
    %341 = vdwg.mxu0
    %v342 = vmin.f32 %v336, 30.0
    %v343 = vmin.f32 %v339, 30.0
    %v344 = vmul.f32 %v342, 1.442695
    %v345 = vpow.pop %v344
    %v346 = vmul.f32 %v343, 1.442695
    %v347 = vpow.pop %v346
    %v348 = vadd.f32 %v345, 2.0
    %v349 = vadd.f32 %v347, 2.0
    %v350 = vmul.f32 %v345, %v348
    %v351 = vmul.f32 %v347, %v349
    %v352 = vmul.f32 %v336, %v350
    %v353 = vmul.f32 %v339, %v351
    %v354 = vadd.f32 %v350, 2.0
    %v355 = vadd.f32 %v351, 2.0
    %v356 = vrcp.pop %v354
    %v357 = vrcp.pop %v355
    %v358 = vmul.f32 %v352, %v356
    %v359 = vmul.f32 %v353, %v357
    %v360 = vld [vmem:[%s1] sm:$0xf]
    %v361 = vld [vmem:[%s1 + $0x4] sm:$0xf]
    %v362 = vpack.c.bf16 %v359, %v358
    %v365 = vunpack.c.l.b16 %v360
    %v366 = vunpack.c.l.b16 %v361
    %v367 = vpack.c.b16 %v366, %v365
    %v369 = vld [vmem:[%s4] sm:$0xf]
    %v370 = vld [vmem:[%s4 + $0x4] sm:$0xf]
    %v371 = vld [vmem:[%s4 + $0x8] sm:$0xf]
    %v372 = vld [vmem:[%s4 + $0xc] sm:$0xf]
    %v377 = vunpack.c.l.b16 %v369
    %v378 = vunpack.c.l.b16 %v370
    %v379 = vunpack.c.l.b16 %v371
    %v380 = vunpack.c.l.b16 %v372
    %v381 = vpack.c.b16 %v378, %v377
    %v382 = vpack.c.b16 %v380, %v379
    %vm383 = vcmask 261120
    %v385 = vsel %vm383, %v381, 0
    %v388 = vsel %vm383, %v382, 0
    %390 = vmatprep.subr.bf16.mxu0 0
    %391 = vmatpush1.bf16.msra.mxu0 0
    %392 = vmatprep.subr.bf16.mxu0 0
    %393 = vmatpush1.bf16.msra.mxu0 0
    %394 = vmatprep.subr.bf16.mxu0 0
    %395 = vmatpush1.bf16.msra.mxu0 0
    %396 = vmatprep.subr.bf16.mxu0 0
    %397 = vmatpush1.bf16.msra.mxu0 0
    %398 = vmatprep.subr.bf16.mxu0 0
    %399 = vmatpush1.bf16.msra.mxu0 0
    %400 = vmatprep.subr.bf16.mxu0 0
    %401 = vmatpush1.bf16.msra.mxu0 0
    %402 = vmatprep.subr.bf16.mxu0 0
    %403 = vmatpush1.bf16.msra.mxu0 %v362
    %404 = vmatprep.subr.bf16.mxu0 0
    %405 = vmatpush1.bf16.msra.mxu0 %v367
    %406 = vmatprep.subr.bf16.mxu0 0
    %407 = vmatpush2.bf16.msra.mxu0 0
    %408 = vmatprep.subr.bf16.mxu0 0
    %409 = vmatpush2.bf16.msra.mxu0 0
    %410 = vmatprep.subr.bf16.mxu0 0
    %411 = vmatpush2.bf16.msra.mxu0 0
    %412 = vmatprep.subr.bf16.mxu0 0
    %413 = vmatpush2.bf16.msra.mxu0 0
    %414 = vmatprep.subr.bf16.mxu0 0
    %415 = vmatpush2.bf16.msra.mxu0 0
    %416 = vmatprep.subr.bf16.mxu0 0
    %417 = vmatpush2.bf16.msra.mxu0 0
    %418 = vmatprep.subr.bf16.mxu0 0
    %419 = vmatpush2.bf16.msra.mxu0 0
    %420 = vmatprep.subr.bf16.mxu0 0
    %421 = vmatpush2.bf16.msra.mxu0 0
    %422 = vmatprep.mubr.bf16.mxu0 0
    %423 = vmatmul.mubr.bf16.gmra.mxu0 %v385
    %v424 = vpop.f32.mrf.mxu0
    %v425 = vadd.f32 0.0, %v424
    %v426 = vpop.f32.mrf.mxu0
    %v427 = vpop.f32.mrf.mxu0
    %v428 = vadd.f32 0.0, %v427
    %v429 = vpop.f32.mrf.mxu0
    %430 = vmatprep.mubr.bf16.mxu0 0
    %431 = vmatmul.mubr.bf16.gmra.mxu0 %v388
    %v432 = vpop.f32.mrf.mxu0
    %v433 = vadd.f32 0.0, %v432
    %v434 = vpop.f32.mrf.mxu0
    %v435 = vpop.f32.mrf.mxu0
    %v436 = vadd.f32 0.0, %v435
    %v437 = vpop.f32.mrf.mxu0
    %438 = vdwg.mxu0
    %v439 = vmin.f32 %v425, 30.0
    %v440 = vmin.f32 %v428, 30.0
    %v441 = vmin.f32 %v433, 30.0
    %v442 = vmin.f32 %v436, 30.0
    %v443 = vmul.f32 %v439, 1.442695
    %v444 = vpow.pop %v443
    %v445 = vmul.f32 %v440, 1.442695
    %v446 = vpow.pop %v445
    %v447 = vmul.f32 %v441, 1.442695
    %v448 = vpow.pop %v447
    %v449 = vmul.f32 %v442, 1.442695
    %v450 = vpow.pop %v449
    %v451 = vadd.f32 %v444, 2.0
    %v452 = vadd.f32 %v446, 2.0
    %v453 = vadd.f32 %v448, 2.0
    %v454 = vadd.f32 %v450, 2.0
    %v455 = vmul.f32 %v444, %v451
    %v456 = vmul.f32 %v446, %v452
    %v457 = vmul.f32 %v448, %v453
    %v458 = vmul.f32 %v450, %v454
    %v459 = vmul.f32 %v425, %v455
    %v460 = vmul.f32 %v428, %v456
    %v461 = vmul.f32 %v433, %v457
    %v462 = vmul.f32 %v436, %v458
    %v463 = vadd.f32 %v455, 2.0
    %v464 = vadd.f32 %v456, 2.0
    %v465 = vadd.f32 %v457, 2.0
    %v466 = vadd.f32 %v458, 2.0
    %v467 = vrcp.pop %v463
    %v468 = vrcp.pop %v464
    %v469 = vrcp.pop %v465
    %v470 = vrcp.pop %v466
    %v471 = vmul.f32 %v459, %v467
    %v472 = vmul.f32 %v460, %v468
    %v473 = vmul.f32 %v461, %v469
    %v474 = vmul.f32 %v462, %v470
    %v475 = vld [vmem:[%s5] sm:$0xf]
    %v476 = vld [vmem:[%s5 + $0x4] sm:$0xf]
    %v477 = vld [vmem:[%s5 + $0x8] sm:$0xf]
    %v478 = vld [vmem:[%s5 + $0xc] sm:$0xf]
    %v479 = vpack.c.bf16 %v472, %v471
    %v480 = vpack.c.bf16 %v474, %v473
    %v481 = vld [vmem:[%s6] sm:$0xff]
    %v482 = vld [vmem:[%s6 + $0x8] sm:$0xff]
    %v483 = vld [vmem:[%s6 + $0x10] sm:$0xff]
    %v484 = vld [vmem:[%s6 + $0x18] sm:$0xff]
    %486 = vset.pattern.permute.xlu0 0
    %487 = vperm.xlu0 %486, %v481
    %v488 = vpop.permute.xlu0 %487
    %491 = vset.pattern.permute.xlu0 0
    %492 = vperm.xlu0 %491, %v482
    %v493 = vpop.permute.xlu0 %492
    %496 = vset.pattern.permute.xlu0 0
    %497 = vperm.xlu0 %496, %v483
    %v498 = vpop.permute.xlu0 %497
    %501 = vset.pattern.permute.xlu0 0
    %502 = vperm.xlu0 %501, %v484
    %v503 = vpop.permute.xlu0 %502
    %v509 = vunpack.c.l.b16 %v475
    %v510 = vunpack.c.l.b16 %v476
    %v511 = vunpack.c.l.b16 %v477
    %v512 = vunpack.c.l.b16 %v478
    %v513 = vpack.c.b16 %v510, %v509
    %v514 = vpack.c.b16 %v512, %v511
    %v516 = vsel %vm383, %v513, 0
    %v519 = vsel %vm383, %v514, 0
    %521 = vmatprep.subr.bf16.mxu0 0
    %522 = vmatpush1.bf16.msra.mxu0 0
    %523 = vmatprep.subr.bf16.mxu0 0
    %524 = vmatpush1.bf16.msra.mxu0 0
    %525 = vmatprep.subr.bf16.mxu0 0
    %526 = vmatpush1.bf16.msra.mxu0 0
    %527 = vmatprep.subr.bf16.mxu0 0
    %528 = vmatpush1.bf16.msra.mxu0 0
    %529 = vmatprep.subr.bf16.mxu0 0
    %530 = vmatpush1.bf16.msra.mxu0 0
    %531 = vmatprep.subr.bf16.mxu0 0
    %532 = vmatpush1.bf16.msra.mxu0 0
    %533 = vmatprep.subr.bf16.mxu0 0
    %534 = vmatpush1.bf16.msra.mxu0 %v480
    %535 = vmatprep.subr.bf16.mxu0 0
    %536 = vmatpush1.bf16.msra.mxu0 %v479
    %537 = vmatprep.subr.bf16.mxu0 0
    %538 = vmatpush2.bf16.msra.mxu0 0
    %539 = vmatprep.subr.bf16.mxu0 0
    %540 = vmatpush2.bf16.msra.mxu0 0
    %541 = vmatprep.subr.bf16.mxu0 0
    %542 = vmatpush2.bf16.msra.mxu0 0
    %543 = vmatprep.subr.bf16.mxu0 0
    %544 = vmatpush2.bf16.msra.mxu0 0
    %545 = vmatprep.subr.bf16.mxu0 0
    %546 = vmatpush2.bf16.msra.mxu0 0
    %547 = vmatprep.subr.bf16.mxu0 0
    %548 = vmatpush2.bf16.msra.mxu0 0
    %549 = vmatprep.subr.bf16.mxu0 0
    %550 = vmatpush2.bf16.msra.mxu0 0
    %551 = vmatprep.subr.bf16.mxu0 0
    %552 = vmatpush2.bf16.msra.mxu0 0
    %553 = vmatprep.mubr.bf16.mxu0 0
    %554 = vmatmul.mubr.bf16.gmra.mxu0 %v516
    %v555 = vpop.f32.mrf.mxu0
    %v556 = vadd.f32 %v488, %v555
    %v557 = vpop.f32.mrf.mxu0
    %v558 = vpop.f32.mrf.mxu0
    %v559 = vadd.f32 %v493, %v558
    %v560 = vpop.f32.mrf.mxu0
    %561 = vmatprep.mubr.bf16.mxu0 0
    %562 = vmatmul.mubr.bf16.gmra.mxu0 %v519
    %v563 = vpop.f32.mrf.mxu0
    %v564 = vadd.f32 %v498, %v563
    %v565 = vpop.f32.mrf.mxu0
    %v566 = vpop.f32.mrf.mxu0
    %v567 = vadd.f32 %v503, %v566
    %v568 = vpop.f32.mrf.mxu0
    %569 = vdwg.mxu0
    %v570 = vmin.f32 %v556, 30.0
    %v571 = vmin.f32 %v559, 30.0
    %v572 = vmin.f32 %v564, 30.0
    %v573 = vmin.f32 %v567, 30.0
    %v574 = vmul.f32 %v570, 1.442695
    %v575 = vpow.pop %v574
    %v576 = vmul.f32 %v571, 1.442695
    %v577 = vpow.pop %v576
    %v578 = vmul.f32 %v572, 1.442695
    %v579 = vpow.pop %v578
    %v580 = vmul.f32 %v573, 1.442695
    %v581 = vpow.pop %v580
    %v582 = vadd.f32 %v575, 2.0
    %v583 = vadd.f32 %v577, 2.0
    %v584 = vadd.f32 %v579, 2.0
    %v585 = vadd.f32 %v581, 2.0
    %v586 = vmul.f32 %v575, %v582
    %v587 = vmul.f32 %v577, %v583
    %v588 = vmul.f32 %v579, %v584
    %v589 = vmul.f32 %v581, %v585
    %v590 = vmul.f32 %v556, %v586
    %v591 = vmul.f32 %v559, %v587
    %v592 = vmul.f32 %v564, %v588
    %v593 = vmul.f32 %v567, %v589
    %v594 = vadd.f32 %v586, 2.0
    %v595 = vadd.f32 %v587, 2.0
    %v596 = vadd.f32 %v588, 2.0
    %v597 = vadd.f32 %v589, 2.0
    %v598 = vrcp.pop %v594
    %v599 = vrcp.pop %v595
    %v600 = vrcp.pop %v596
    %v601 = vrcp.pop %v597
    %v602 = vmul.f32 %v590, %v598
    %v603 = vmul.f32 %v591, %v599
    %v604 = vmul.f32 %v592, %v600
    %v605 = vmul.f32 %v593, %v601
    %v606 = vld [vmem:[%s7] sm:$0xf]
    %v607 = vld [vmem:[%s7 + $0x4] sm:$0xf]
    %v608 = vld [vmem:[%s7 + $0x8] sm:$0xf]
    %v609 = vld [vmem:[%s7 + $0xc] sm:$0xf]
    %v610 = vpack.c.bf16 %v603, %v602
    %v611 = vpack.c.bf16 %v605, %v604
    %v612 = vld [vmem:[%s8] sm:$0xff]
    %v613 = vld [vmem:[%s8 + $0x8] sm:$0xff]
    %v614 = vld [vmem:[%s8 + $0x10] sm:$0xff]
    %v615 = vld [vmem:[%s8 + $0x18] sm:$0xff]
    %617 = vset.pattern.permute.xlu0 0
    %618 = vperm.xlu0 %617, %v612
    %v619 = vpop.permute.xlu0 %618
    %622 = vset.pattern.permute.xlu0 0
    %623 = vperm.xlu0 %622, %v613
    %v624 = vpop.permute.xlu0 %623
    %627 = vset.pattern.permute.xlu0 0
    %628 = vperm.xlu0 %627, %v614
    %v629 = vpop.permute.xlu0 %628
    %632 = vset.pattern.permute.xlu0 0
    %633 = vperm.xlu0 %632, %v615
    %v634 = vpop.permute.xlu0 %633
    %v640 = vunpack.c.l.b16 %v606
    %v641 = vunpack.c.l.b16 %v607
    %v642 = vunpack.c.l.b16 %v608
    %v643 = vunpack.c.l.b16 %v609
    %v644 = vpack.c.b16 %v641, %v640
    %v645 = vpack.c.b16 %v643, %v642
    %v647 = vsel %vm383, %v644, 0
    %v650 = vsel %vm383, %v645, 0
    %652 = vmatprep.subr.bf16.mxu0 0
    %653 = vmatpush1.bf16.msra.mxu0 0
    %654 = vmatprep.subr.bf16.mxu0 0
    %655 = vmatpush1.bf16.msra.mxu0 0
    %656 = vmatprep.subr.bf16.mxu0 0
    %657 = vmatpush1.bf16.msra.mxu0 0
    %658 = vmatprep.subr.bf16.mxu0 0
    %659 = vmatpush1.bf16.msra.mxu0 0
    %660 = vmatprep.subr.bf16.mxu0 0
    %661 = vmatpush1.bf16.msra.mxu0 0
    %662 = vmatprep.subr.bf16.mxu0 0
    %663 = vmatpush1.bf16.msra.mxu0 0
    %664 = vmatprep.subr.bf16.mxu0 0
    %665 = vmatpush1.bf16.msra.mxu0 %v611
    %666 = vmatprep.subr.bf16.mxu0 0
    %667 = vmatpush1.bf16.msra.mxu0 %v610
    %668 = vmatprep.subr.bf16.mxu0 0
    %669 = vmatpush2.bf16.msra.mxu0 0
    %670 = vmatprep.subr.bf16.mxu0 0
    %671 = vmatpush2.bf16.msra.mxu0 0
    %672 = vmatprep.subr.bf16.mxu0 0
    %673 = vmatpush2.bf16.msra.mxu0 0
    %674 = vmatprep.subr.bf16.mxu0 0
    %675 = vmatpush2.bf16.msra.mxu0 0
    %676 = vmatprep.subr.bf16.mxu0 0
    %677 = vmatpush2.bf16.msra.mxu0 0
    %678 = vmatprep.subr.bf16.mxu0 0
    %679 = vmatpush2.bf16.msra.mxu0 0
    %680 = vmatprep.subr.bf16.mxu0 0
    %681 = vmatpush2.bf16.msra.mxu0 0
    %682 = vmatprep.subr.bf16.mxu0 0
    %683 = vmatpush2.bf16.msra.mxu0 0
    %684 = vmatprep.mubr.bf16.mxu0 0
    %685 = vmatmul.mubr.bf16.gmra.mxu0 %v647
    %v686 = vpop.f32.mrf.mxu0
    %v687 = vadd.f32 %v619, %v686
    %v688 = vpop.f32.mrf.mxu0
    %v689 = vpop.f32.mrf.mxu0
    %v690 = vadd.f32 %v624, %v689
    %v691 = vpop.f32.mrf.mxu0
    %692 = vmatprep.mubr.bf16.mxu0 0
    %693 = vmatmul.mubr.bf16.gmra.mxu0 %v650
    %v694 = vpop.f32.mrf.mxu0
    %v695 = vadd.f32 %v629, %v694
    %v696 = vpop.f32.mrf.mxu0
    %v697 = vpop.f32.mrf.mxu0
    %v698 = vadd.f32 %v634, %v697
    %v699 = vpop.f32.mrf.mxu0
    %700 = vdwg.mxu0
    %v701 = vmin.f32 %v687, 30.0
    %v702 = vmin.f32 %v690, 30.0
    %v703 = vmin.f32 %v695, 30.0
    %v704 = vmin.f32 %v698, 30.0
    %v705 = vmul.f32 %v701, 1.442695
    %v706 = vpow.pop %v705
    %v707 = vmul.f32 %v702, 1.442695
    %v708 = vpow.pop %v707
    %v709 = vmul.f32 %v703, 1.442695
    %v710 = vpow.pop %v709
    %v711 = vmul.f32 %v704, 1.442695
    %v712 = vpow.pop %v711
    %v713 = vadd.f32 %v706, 2.0
    %v714 = vadd.f32 %v708, 2.0
    %v715 = vadd.f32 %v710, 2.0
    %v716 = vadd.f32 %v712, 2.0
    %v717 = vmul.f32 %v706, %v713
    %v718 = vmul.f32 %v708, %v714
    %v719 = vmul.f32 %v710, %v715
    %v720 = vmul.f32 %v712, %v716
    %v721 = vmul.f32 %v687, %v717
    %v722 = vmul.f32 %v690, %v718
    %v723 = vmul.f32 %v695, %v719
    %v724 = vmul.f32 %v698, %v720
    %v725 = vadd.f32 %v717, 2.0
    %v726 = vadd.f32 %v718, 2.0
    %v727 = vadd.f32 %v719, 2.0
    %v728 = vadd.f32 %v720, 2.0
    %v729 = vrcp.pop %v725
    %v730 = vrcp.pop %v726
    %v731 = vrcp.pop %v727
    %v732 = vrcp.pop %v728
    %v733 = vmul.f32 %v721, %v729
    %v734 = vmul.f32 %v722, %v730
    %v735 = vmul.f32 %v723, %v731
    %v736 = vmul.f32 %v724, %v732
    %v737 = vld [vmem:[%s9] sm:$0x3]
    %v738 = vpack.c.bf16 %v734, %v733
    %v739 = vpack.c.bf16 %v736, %v735
    %v740 = vld [vmem:[%s10] sm:$0x7]
    %742 = vset.pattern.permute.xlu0 0
    %743 = vperm.xlu0 %742, %v740
    %v744 = vpop.permute.xlu0 %743
    %v747 = vsel %vm383, %v737, 0
    %749 = vmatprep.subr.bf16.mxu0 0
    %750 = vmatpush1.bf16.msra.mxu0 0
    %751 = vmatprep.subr.bf16.mxu0 0
    %752 = vmatpush1.bf16.msra.mxu0 0
    %753 = vmatprep.subr.bf16.mxu0 0
    %754 = vmatpush1.bf16.msra.mxu0 0
    %755 = vmatprep.subr.bf16.mxu0 0
    %756 = vmatpush1.bf16.msra.mxu0 0
    %757 = vmatprep.subr.bf16.mxu0 0
    %758 = vmatpush1.bf16.msra.mxu0 0
    %759 = vmatprep.subr.bf16.mxu0 0
    %760 = vmatpush1.bf16.msra.mxu0 0
    %761 = vmatprep.subr.bf16.mxu0 0
    %762 = vmatpush1.bf16.msra.mxu0 %v739
    %763 = vmatprep.subr.bf16.mxu0 0
    %764 = vmatpush1.bf16.msra.mxu0 %v738
    %765 = vmatprep.subr.bf16.mxu0 0
    %766 = vmatpush2.bf16.msra.mxu0 0
    %767 = vmatprep.subr.bf16.mxu0 0
    %768 = vmatpush2.bf16.msra.mxu0 0
    %769 = vmatprep.subr.bf16.mxu0 0
    %770 = vmatpush2.bf16.msra.mxu0 0
    %771 = vmatprep.subr.bf16.mxu0 0
    %772 = vmatpush2.bf16.msra.mxu0 0
    %773 = vmatprep.subr.bf16.mxu0 0
    %774 = vmatpush2.bf16.msra.mxu0 0
    %775 = vmatprep.subr.bf16.mxu0 0
    %776 = vmatpush2.bf16.msra.mxu0 0
    %777 = vmatprep.subr.bf16.mxu0 0
    %778 = vmatpush2.bf16.msra.mxu0 0
    %779 = vmatprep.subr.bf16.mxu0 0
    %780 = vmatpush2.bf16.msra.mxu0 0
    %781 = vmatprep.mubr.bf16.mxu0 0
    %782 = vmatmul.mubr.bf16.gmra.mxu0 %v747
    %v783 = vpop.f32.mrf.mxu0
    %v784 = vadd.f32 %v744, %v783
    %v785 = vpop.f32.mrf.mxu0
    %v786 = vpop.f32.mrf.mxu0
    %v787 = vpop.f32.mrf.mxu0
    %788 = vdwg.mxu0
    %vm789 = vcmask 59392
    %790 = vst.msk [vmem:[#allocation2] sm:$0x7] %vm789, %v784
    // Predicated region
    $region46: #{tpu_custom_call.1} parent=1 // pred_check
      _
    $region47: #{tpu_custom_call.1} parent=1 // pred_check_branch
      %792 = sbr.rel (0) target = $region49
    $region48: #{tpu_custom_call.1} parent=1 // pred_region
      %s794 = ssub.s32 64, 64
      %795 = vsyncadd [#allocation3], %s794
      %s797 = sshll.u32 [#allocation2], 4
      %s798 = int_to_ptr.vmem [resolvable:$true] %s797
      %800 = dma.vmem_to_hbm [thread:$0]  %s798, 64, %s11, [#allocation3]
    $region49: #{tpu_custom_call.1} parent=1 // pred_fallthru
      _
    // Predicated region
    $region50: #{tpu_custom_call.1} parent=1 // pred_check
      _
    $region51: #{tpu_custom_call.1} parent=1 // pred_check_branch
      %802 = sbr.rel (0) target = $region53
    $region52: #{tpu_custom_call.1} parent=1 // pred_region
      %803 = dma.done [#allocation3], 64
    $region53: #{tpu_custom_call.1} parent=1 // pred_fallthru
      _
    %804 = vsyncpa [#allocation3], 1

</llo_original>
